<compile_context>
chip_gen: v7x
topology: tpu7x:2x2x1
jax: 0.10.0
libtpu: 0.0.40
codegen_flags: <defaults>
</compile_context>

<pallas_src>
import functools
import math

import jax
import jax.numpy as jnp
from jax.experimental import pallas as pl
from jax.experimental.pallas import tpu as pltpu


# ----------------------------- hardware knobs ------------------------------ #
def _vmem_capacity_bytes():
    try:
        return int(pltpu.get_tpu_info().vmem_capacity_bytes)
    except Exception:
        return 128 << 20          # v5e / v6e default; v7x reports its own 64 MiB


def _vmem_budget():
    cap = _vmem_capacity_bytes()
    return min(cap // 4, 32 << 20), cap


_TM_CANDIDATES = (2048, 1024, 512, 256)


def _pick_tm(M, bytes_per_row, budget):
    """Largest row tile fitting the streaming VMEM budget; prefer >= 4 grid
    steps (2 per TensorCore after megacore sharding on v7x), then >= 2."""
    for min_steps in (4, 2):
        for tm in _TM_CANDIDATES:
            if tm * bytes_per_row <= budget and M % tm == 0 and M // tm >= min_steps:
                return tm
    if M <= 2048 and M * bytes_per_row <= budget:
        return M                              # single resident step, no padding
    for tm in _TM_CANDIDATES + (128,):
        if tm * bytes_per_row <= budget and M % tm == 0:
            return tm
    for tm in _TM_CANDIDATES + (128,):
        if tm * bytes_per_row <= budget:
            return tm                         # rows will be zero-padded
    return 128


def _pick_fold(n_out, rows):
    """Row-folding factor so the output tile width is a multiple of 128 lanes
    (unmasked, lane-dense stores) when the raw N is narrower than a vreg."""
    if n_out % 128 == 0:
        return 1
    f = 128 // math.gcd(n_out, 128)
    if f > 1 and rows % f == 0:
        return f
    return 1


def _kron_eye(w, fold):
    """Block-diagonal [[w,0,..],[0,w,..],..] with `fold` blocks."""
    if fold == 1:
        return w
    return jnp.kron(jnp.eye(fold, dtype=w.dtype), w)


# ----------------------- kernel 1: dual fused matmul ----------------------- #
def _dual_matmul_kernel(x1_ref, w1_ref, x2_ref, w2_ref, shift_ref, o_ref, *, relu):
    """o = epilogue( x1 @ w1 + x2 @ w2 + shift ), f32 accumulation on the MXU."""
    acc = jnp.dot(x1_ref[...], w1_ref[...], preferred_element_type=jnp.float32)
    acc = acc + jnp.dot(x2_ref[...], w2_ref[...], preferred_element_type=jnp.float32)
    acc = acc + shift_ref[...]                       # folded conv-bias + BN shift
    if relu:
        acc = jnp.maximum(acc, 0.0)
    o_ref[...] = acc.astype(o_ref.dtype)


def dual_matmul(x1, w1, x2, w2, shift, *, relu=False, out_dtype=jnp.float32):
    """epilogue( x1 @ w1 + x2 @ w2 + shift ), rows tiled on a 1-D grid.
    Both weights (with BN scale / selectors already folded in) stay resident
    in VMEM; activations are streamed in bf16 with f32 accumulation."""
    M, K1 = x1.shape
    M2, K2 = x2.shape
    N = w1.shape[1]
    assert M == M2 and w1.shape[0] == K1 and w2.shape == (K2, N)

    x1 = x1.astype(jnp.bfloat16)
    x2 = x2.astype(jnp.bfloat16)
    w1 = w1.astype(jnp.bfloat16)
    w2 = w2.astype(jnp.bfloat16)
    shift = shift.reshape(1, N).astype(jnp.float32)

    out_isz = jnp.dtype(out_dtype).itemsize
    budget, cap = _vmem_budget()
    bytes_per_row = 2 * ((K1 + K2) * 2 + N * out_isz)    # double-buffered streams
    tm = _pick_tm(M, bytes_per_row, budget)

    Mp = ((M + tm - 1) // tm) * tm
    if Mp != M:                                          # only if no tile divides M
        x1 = jnp.pad(x1, ((0, Mp - M), (0, 0)))
        x2 = jnp.pad(x2, ((0, Mp - M), (0, 0)))

    est = tm * bytes_per_row + 2 * (K1 + K2) * N * 2 + 2 * N * 4 + (2 << 20)
    vmem_limit = int(min(max(est, 16 << 20), cap * 3 // 4))

    out = pl.pallas_call(
        functools.partial(_dual_matmul_kernel, relu=relu),
        out_shape=jax.ShapeDtypeStruct((Mp, N), out_dtype),
        grid=(Mp // tm,),
        in_specs=[
            pl.BlockSpec((tm, K1), lambda i: (i, 0)),    # activation rows tile
            pl.BlockSpec((K1, N), lambda i: (0, 0)),     # resident weight 1
            pl.BlockSpec((tm, K2), lambda i: (i, 0)),    # second activation stream
            pl.BlockSpec((K2, N), lambda i: (0, 0)),     # resident weight 2
            pl.BlockSpec((1, N), lambda i: (0, 0)),      # folded bias / BN shift
        ],
        out_specs=pl.BlockSpec((tm, N), lambda i: (i, 0)),
        compiler_params=pltpu.CompilerParams(
            dimension_semantics=("parallel",),
            vmem_limit_bytes=vmem_limit),
    )(x1, w1, x2, w2, shift)
    return out[:M] if Mp != M else out


# ---------------- kernel 2: fused 3x3 conv for conv_offset ----------------- #
def _conv_offset_kernel(x_ref, w_ref, ml_ref, mr_ref, b_ref, o_ref,
                        *, H, W, sig_lo, sig_hi):
    """3x3 / stride 1 / pad 1 conv of one image, taps = shifted VMEM slices of
    a row-halo'ed flat block; + bias; sigmoid on the mask lanes only."""
    HW = H * W
    N = w_ref.shape[2]
    x = x_ref[0]                                         # (HW + 2W + 2, 2C) bf16
    acc = jnp.zeros((HW, N), jnp.float32)
    for kw in range(3):
        part = jnp.zeros((HW, N), jnp.float32)
        for kh in range(3):
            start = kh * W + kw                          # static tap offset
            tap = x[start:start + HW, :]                 # shifted VMEM slice
            part = part + jnp.dot(tap, w_ref[kh * 3 + kw],
                                  preferred_element_type=jnp.float32)
        if kw == 0:                                      # zero the w == 0 column
            part = part * ml_ref[...]
        elif kw == 2:                                    # zero the w == W-1 column
            part = part * mr_ref[...]
        acc = acc + part
    acc = acc + b_ref[...]                               # conv bias (padded lanes 0)
    lane = jax.lax.broadcasted_iota(jnp.int32, acc.shape, 1)
    sig = pl.reciprocal(1.0 + jnp.exp(-acc), approx=True)   # EUP exp + approx recip
    acc = jnp.where((lane >= sig_lo) & (lane < sig_hi), sig, acc)
    o_ref[0] = acc


def conv_offset_3x3(concat_rows, w_taps, bias, B, H, W):
    """Fused conv_offset over (flipped ++ proj1); returns (B, H*W, 128) f32 with
    lanes 0..17 = offsets, 18..26 = sigmoid(mask), 27..127 = 0.  No im2col."""
    # TODO(synk): tile along H (halo'ed inner pipeline) for very large H*W
    # instead of one whole image per grid step.
    C2 = concat_rows.shape[-1]
    HW = H * W
    N = w_taps.shape[-1]
    cflat = concat_rows.reshape(B, HW, C2)
    # A flat halo of W+1 zero rows handles the h = -1 / h = H edges; the w
    # edges are handled by the per-tap edge masks below.
    cpad = jnp.pad(cflat, ((0, 0), (W + 1, W + 1), (0, 0)))
    w_idx = jnp.arange(HW, dtype=jnp.int32) % W
    mask_l = (w_idx > 0).astype(jnp.float32).reshape(HW, 1)
    mask_r = (w_idx < W - 1).astype(jnp.float32).reshape(HW, 1)

    budget, cap = _vmem_budget()
    est = (2 * cpad.shape[1] * C2 * 2 + 2 * HW * N * 4
           + 2 * 9 * C2 * N * 2 + 4 * HW * 4 + (2 << 20))
    vmem_limit = int(min(max(est, 16 << 20), cap * 3 // 4))

    return pl.pallas_call(
        functools.partial(_conv_offset_kernel, H=H, W=W, sig_lo=18, sig_hi=27),
        out_shape=jax.ShapeDtypeStruct((B, HW, N), jnp.float32),
        grid=(B,),
        in_specs=[
            pl.BlockSpec((1, HW + 2 * W + 2, C2), lambda b: (b, 0, 0)),
            pl.BlockSpec((9, C2, N), lambda b: (0, 0, 0)),   # resident tap weights
            pl.BlockSpec((HW, 1), lambda b: (0, 0)),          # left-edge tap mask
            pl.BlockSpec((HW, 1), lambda b: (0, 0)),          # right-edge tap mask
            pl.BlockSpec((1, N), lambda b: (0, 0)),            # conv bias
        ],
        out_specs=pl.BlockSpec((1, HW, N), lambda b: (b, 0, 0)),
        compiler_params=pltpu.CompilerParams(
            dimension_semantics=("parallel",),
            vmem_limit_bytes=vmem_limit),
    )(cpad, w_taps.astype(jnp.bfloat16), mask_l, mask_r,
      bias.reshape(1, N).astype(jnp.float32))


# -------------------------------- JAX glue --------------------------------- #
def bn_fold(gamma, beta, mean, var, eps=1e-5):
    scale = gamma / jnp.sqrt(var + eps)
    return scale, beta - mean * scale


def deform_im2col_nhwc(x, offset, mask, pad=1):
    """Modulated deformable im2col (mmcv semantics, deform_groups=1, stride=1,
    dilation=1), NHWC.  x:(B,H,W,C) offset:(B,H,W,18) mask:(B,H,W,9)
    -> bf16 (B*H*W, 9*C) with K ordering = (kh*3+kw)*C + ci."""
    # TODO(synk): move this data-dependent bilinear gather into a Pallas kernel
    # with the per-batch flipped feature slab resident in VMEM (XLA gather now).
    B, H, W, C = x.shape
    K = 9
    dy = offset[..., 0::2].astype(jnp.float32)        # channel 2k   -> dy of tap k
    dx = offset[..., 1::2].astype(jnp.float32)        # channel 2k+1 -> dx of tap k
    ys = jnp.arange(H, dtype=jnp.float32).reshape(1, H, 1, 1)
    xs = jnp.arange(W, dtype=jnp.float32).reshape(1, 1, W, 1)
    kh = (jnp.arange(K) // 3).astype(jnp.float32).reshape(1, 1, 1, K)
    kw = (jnp.arange(K) % 3).astype(jnp.float32).reshape(1, 1, 1, K)
    py = ys - pad + kh + dy
    px = xs - pad + kw + dx
    y0 = jnp.floor(py)
    x0 = jnp.floor(px)
    wy1, wx1 = py - y0, px - x0
    wy0, wx0 = 1.0 - wy1, 1.0 - wx1
    flat = x.astype(jnp.bfloat16).reshape(B, H * W, C)   # halve gather traffic

    def corner(yc, xc):
        valid = (yc >= 0) & (yc < H) & (xc >= 0) & (xc < W)
        yi = jnp.clip(yc, 0, H - 1).astype(jnp.int32)
        xi = jnp.clip(xc, 0, W - 1).astype(jnp.int32)
        idx = (yi * W + xi).reshape(B, H * W * K, 1)
        g = jnp.take_along_axis(flat, jnp.broadcast_to(idx, (B, H * W * K, C)),
                                axis=1)
        g = g.reshape(B, H, W, K, C)
        return g * valid[..., None].astype(flat.dtype)

    val = (corner(y0, x0) * (wy0 * wx0)[..., None]
           + corner(y0, x0 + 1.0) * (wy0 * wx1)[..., None]
           + corner(y0 + 1.0, x0) * (wy1 * wx0)[..., None]
           + corner(y0 + 1.0, x0 + 1.0) * (wy1 * wx1)[..., None])
    val = val * mask[..., None]                           # modulation
    return val.astype(jnp.bfloat16).reshape(B * H * W, K * C)   # bf16 at producer


# ------------------------------ module forward ----------------------------- #
def feature_flip_fusion_forward(feature, p):
    """feature: (B, C, H, W) float32 -> (B, C, H, W) float32."""
    B, C, H, W = feature.shape
    M = B * H * W
    x = jnp.transpose(feature, (0, 2, 3, 1))              # NHWC once at entry
    flipped = x[:, :, ::-1, :]                            # flip along W

    # --- stage 1: proj1 = Conv1x1 + folded BN, fused with the channel concat.
    # Output rows are [flipped | proj1] in bf16; for small C the rows are folded
    # so the store tile is a 128-lane multiple (no masked partial stores).
    s1, bsh1 = bn_fold(p['bn1_gamma'], p['bn1_beta'], p['bn1_mean'], p['bn1_var'])
    w1 = p['w1'].reshape(C, C).T * s1[None, :]             # (Cin, Cout) * bn scale
    shift1 = p['b1'] * s1 + bsh1
    eye_c = jnp.eye(C, dtype=jnp.float32)
    zeros_cc = jnp.zeros((C, C), jnp.float32)
    a0 = jnp.concatenate([zeros_cc, w1], axis=1)           # x rows    -> proj half
    b0 = jnp.concatenate([eye_c, zeros_cc], axis=1)        # flip rows -> passthrough
    sh0 = jnp.concatenate([jnp.zeros((C,), jnp.float32), shift1])
    fold1 = _pick_fold(2 * C, M)
    concat_rows = dual_matmul(
        x.reshape(M // fold1, fold1 * C), _kron_eye(a0, fold1),
        flipped.reshape(M // fold1, fold1 * C), _kron_eye(b0, fold1),
        jnp.tile(sh0, fold1), relu=False,
        out_dtype=jnp.bfloat16).reshape(M, 2 * C)          # [:, :C]=flip, [:, C:]=proj

    # --- stage 2: conv_offset = Conv(2C, 27, 3, pad=1), fused tap-loop kernel.
    # f32 output so offsets + modulation mask keep full precision.
    w_off = p['w_off'].transpose(2, 3, 1, 0).reshape(9, 2 * C, 27)
    w_off = jnp.pad(w_off, ((0, 0), (0, 0), (0, 128 - 27)))   # lane-dense output
    b_off = jnp.pad(p['b_off'], (0, 128 - 27))
    off_maps = conv_offset_3x3(concat_rows, w_off, b_off, B, H, W)
    off_maps = off_maps.reshape(B, H, W, 128)
    offset = off_maps[..., 0:18]                           # == cat(o1, o2)
    mask = off_maps[..., 18:27]                            # already sigmoid'ed

    # --- stage 3: modulated deformable 3x3 conv + BN + residual add + ReLU.
    cols_d = deform_im2col_nhwc(flipped, offset, mask)     # (M, 9C) bf16
    s2, bsh2 = bn_fold(p['bn2_gamma'], p['bn2_beta'], p['bn2_mean'], p['bn2_var'])
    w_d = p['w_d'].transpose(2, 3, 1, 0).reshape(9 * C, C) * s2[None, :]
    shift2 = p['b_d'] * s2 + bsh2
    sel = jnp.concatenate([zeros_cc, eye_c], axis=0)       # (2C, C): picks proj1
    fold3 = _pick_fold(C, M)
    out_rows = dual_matmul(
        cols_d.reshape(M // fold3, fold3 * 9 * C), _kron_eye(w_d, fold3),
        concat_rows.reshape(M // fold3, fold3 * 2 * C), _kron_eye(sel, fold3),
        jnp.tile(shift2, fold3), relu=True,
        out_dtype=jnp.float32).reshape(M, C)
    # TODO(synk): fold this NHWC->NCHW exit transpose into the final kernel
    # (in-kernel XLU transpose) once small-C transposes lower robustly.
    return out_rows.reshape(B, H, W, C).transpose(0, 3, 1, 2)


# -------------------------------- parameters ------------------------------- #
def init_params(key, C):
    ks = jax.random.split(key, 8)
    p = {}
    # proj1: Conv2d(C, C, 1) + BN
    p['w1'] = 0.1 * jax.random.normal(ks[0], (C, C, 1, 1), jnp.float32)
    p['b1'] = 0.1 * jax.random.normal(ks[1], (C,), jnp.float32)
    p['bn1_gamma'] = 1.0 + 0.1 * jax.random.normal(ks[2], (C,), jnp.float32)
    p['bn1_beta'] = 0.1 * jax.random.normal(ks[3], (C,), jnp.float32)
    p['bn1_mean'] = 0.1 * jax.random.normal(ks[4], (C,), jnp.float32)
    p['bn1_var'] = 1.0 + 0.5 * jax.random.uniform(ks[5], (C,), jnp.float32)
    # DCNV2_Ref.conv_offset: zero-initialized per init_weights()
    p['w_off'] = jnp.zeros((27, 2 * C, 3, 3), jnp.float32)
    p['b_off'] = jnp.zeros((27,), jnp.float32)
    # DCNV2_Ref main weight: uniform(-stdv, stdv), bias zero (mmcv init)
    stdv = 1.0 / math.sqrt(C * 9)
    p['w_d'] = jax.random.uniform(ks[6], (C, C, 3, 3), jnp.float32,
                                  minval=-stdv, maxval=stdv)
    p['b_d'] = jnp.zeros((C,), jnp.float32)
    # proj2_norm BN (fresh default stats: mean 0, var 1, beta 0)
    p['bn2_gamma'] = 1.0 + 0.1 * jax.random.normal(ks[7], (C,), jnp.float32)
    p['bn2_beta'] = jnp.zeros((C,), jnp.float32)
    p['bn2_mean'] = jnp.zeros((C,), jnp.float32)
    p['bn2_var'] = jnp.ones((C,), jnp.float32)
    return p


if __name__ == "__main__":
    B, C, H, W = 2, 4, 16, 16
    key = jax.random.PRNGKey(0)
    k_in, k_par = jax.random.split(key)
    feature = jax.random.normal(k_in, (B, C, H, W), jnp.float32)
    params = init_params(k_par, C)

    fwd = jax.jit(feature_flip_fusion_forward)
    out = jax.block_until_ready(fwd(feature, params))
    assert out.shape == (B, C, H, W)
    assert bool(jnp.all(jnp.isfinite(out)))
    assert bool(jnp.all(out >= 0.0))   # final ReLU
    print("KERNEL_OK")
</pallas_src>

<mosaic_0001>
module attributes {stable_mosaic.version = 11 : i64} {
  func.func @_dual_matmul_kernel(%arg0: i32, %arg1: memref<32x64xbf16, #tpu.memory_space<vmem>>, %arg2: memref<64x128xbf16, #tpu.memory_space<vmem>>, %arg3: memref<32x64xbf16, #tpu.memory_space<vmem>>, %arg4: memref<64x128xbf16, #tpu.memory_space<vmem>>, %arg5: memref<1x128xf32, #tpu.memory_space<vmem>>, %arg6: memref<32x128xbf16, #tpu.memory_space<vmem>>) attributes {dimension_semantics = [#tpu.dimension_semantics<parallel>], iteration_bounds = array<i64: 1>, scalar_prefetch = 0 : i64, scratch_operands = 0 : i64, tpu.core_type = #tpu.core_type<tc>, window_params = [{transform_indices = @transform_0, window_bounds = array<i64: 32, 64>}, {pipeline_mode = #tpu.pipeline_mode<synchronous>, transform_indices = @transform_1, window_bounds = array<i64: 64, 128>}, {transform_indices = @transform_2, window_bounds = array<i64: 32, 64>}, {pipeline_mode = #tpu.pipeline_mode<synchronous>, transform_indices = @transform_3, window_bounds = array<i64: 64, 128>}, {pipeline_mode = #tpu.pipeline_mode<synchronous>, transform_indices = @transform_4, window_bounds = array<i64: 1, 128>}, {transform_indices = @transform_5, window_bounds = array<i64: 32, 128>}]} {
    %c0 = arith.constant 0 : index
    %c0_0 = arith.constant 0 : index
    %0 = vector.load %arg1[%c0, %c0_0] : memref<32x64xbf16, #tpu.memory_space<vmem>>, vector<32x64xbf16>
    %c0_1 = arith.constant 0 : index
    %c0_2 = arith.constant 0 : index
    %1 = vector.load %arg2[%c0_1, %c0_2] : memref<64x128xbf16, #tpu.memory_space<vmem>>, vector<64x128xbf16>
    %cst = arith.constant dense<0.000000e+00> : vector<32x128xf32>
    %2 = tpu.matmul %0, %1, %cst {dimension_numbers = #tpu.dot_dimension_numbers<[1], [0], [0], [1], [0, 0, 1, 1], [], []>} : vector<32x64xbf16>, vector<64x128xbf16>, vector<32x128xf32> -> vector<32x128xf32>
    %c0_3 = arith.constant 0 : index
    %c0_4 = arith.constant 0 : index
    %3 = vector.load %arg3[%c0_3, %c0_4] : memref<32x64xbf16, #tpu.memory_space<vmem>>, vector<32x64xbf16>
    %c0_5 = arith.constant 0 : index
    %c0_6 = arith.constant 0 : index
    %4 = vector.load %arg4[%c0_5, %c0_6] : memref<64x128xbf16, #tpu.memory_space<vmem>>, vector<64x128xbf16>
    %cst_7 = arith.constant dense<0.000000e+00> : vector<32x128xf32>
    %5 = tpu.matmul %3, %4, %cst_7 {dimension_numbers = #tpu.dot_dimension_numbers<[1], [0], [0], [1], [0, 0, 1, 1], [], []>} : vector<32x64xbf16>, vector<64x128xbf16>, vector<32x128xf32> -> vector<32x128xf32>
    %6 = arith.addf %2, %5 : vector<32x128xf32>
    %c0_8 = arith.constant 0 : index
    %c0_9 = arith.constant 0 : index
    %7 = vector.load %arg5[%c0_8, %c0_9] : memref<1x128xf32, #tpu.memory_space<vmem>>, vector<1x128xf32>
    %8 = vector.broadcast %7 : vector<1x128xf32> to vector<32x128xf32>
    %9 = arith.addf %6, %8 : vector<32x128xf32>
    %10 = arith.truncf %9 : vector<32x128xf32> to vector<32x128xbf16>
    %c0_10 = arith.constant 0 : index
    %c0_11 = arith.constant 0 : index
    %11 = vector.load %arg6[%c0_10, %c0_11] : memref<32x128xbf16, #tpu.memory_space<vmem>>, vector<32x128xbf16>
    tpu.vector_store %arg6[%c0_10, %c0_11], %10 {strides = array<i32>} : memref<32x128xbf16, #tpu.memory_space<vmem>>, vector<32x128xbf16>,
    return
  }
  func.func @transform_0(%arg0: i32) -> (i32, i32) {
    %c0_i32 = arith.constant 0 : i32
    %c0_i32_0 = arith.constant 0 : i32
    return %arg0, %c0_i32 : i32, i32
  }
  func.func @transform_1(%arg0: i32) -> (i32, i32) {
    %c0_i32 = arith.constant 0 : i32
    %c0_i32_0 = arith.constant 0 : i32
    %c0_i32_1 = arith.constant 0 : i32
    return %c0_i32, %c0_i32_0 : i32, i32
  }
  func.func @transform_2(%arg0: i32) -> (i32, i32) {
    %c0_i32 = arith.constant 0 : i32
    %c0_i32_0 = arith.constant 0 : i32
    return %arg0, %c0_i32 : i32, i32
  }
  func.func @transform_3(%arg0: i32) -> (i32, i32) {
    %c0_i32 = arith.constant 0 : i32
    %c0_i32_0 = arith.constant 0 : i32
    %c0_i32_1 = arith.constant 0 : i32
    return %c0_i32, %c0_i32_0 : i32, i32
  }
  func.func @transform_4(%arg0: i32) -> (i32, i32) {
    %c0_i32 = arith.constant 0 : i32
    %c0_i32_0 = arith.constant 0 : i32
    %c0_i32_1 = arith.constant 0 : i32
    return %c0_i32, %c0_i32_0 : i32, i32
  }
  func.func @transform_5(%arg0: i32) -> (i32, i32) {
    %c0_i32 = arith.constant 0 : i32
    %c0_i32_0 = arith.constant 0 : i32
    return %arg0, %c0_i32 : i32, i32
  }
}

module attributes {stable_mosaic.version = 11 : i64} {
  func.func @_conv_offset_kernel(%arg0: i32, %arg1: memref<1x290x8xbf16, #tpu.memory_space<vmem>>, %arg2: memref<9x8x128xbf16, #tpu.memory_space<vmem>>, %arg3: memref<256x1xf32, #tpu.memory_space<vmem>>, %arg4: memref<256x1xf32, #tpu.memory_space<vmem>>, %arg5: memref<1x128xf32, #tpu.memory_space<vmem>>, %arg6: memref<1x256x128xf32, #tpu.memory_space<vmem>>) attributes {dimension_semantics = [#tpu.dimension_semantics<parallel>], iteration_bounds = array<i64: 2>, scalar_prefetch = 0 : i64, scratch_operands = 0 : i64, tpu.core_type = #tpu.core_type<tc>, window_params = [{transform_indices = @transform_0, window_bounds = array<i64: 1, 290, 8>}, {pipeline_mode = #tpu.pipeline_mode<synchronous>, transform_indices = @transform_1, window_bounds = array<i64: 9, 8, 128>}, {pipeline_mode = #tpu.pipeline_mode<synchronous>, transform_indices = @transform_2, window_bounds = array<i64: 256, 1>}, {pipeline_mode = #tpu.pipeline_mode<synchronous>, transform_indices = @transform_3, window_bounds = array<i64: 256, 1>}, {pipeline_mode = #tpu.pipeline_mode<synchronous>, transform_indices = @transform_4, window_bounds = array<i64: 1, 128>}, {transform_indices = @transform_5, window_bounds = array<i64: 1, 256, 128>}]} {
    %c0 = arith.constant 0 : index
    %c0_0 = arith.constant 0 : index
    %c0_1 = arith.constant 0 : index
    %0 = vector.load %arg1[%c0, %c0_0, %c0_1] : memref<1x290x8xbf16, #tpu.memory_space<vmem>>, vector<1x290x8xbf16>
    %1 = vector.shape_cast %0 : vector<1x290x8xbf16> to vector<290x8xbf16>
    %cst = arith.constant 0.000000e+00 : f32
    %2 = vector.broadcast %cst : f32 to vector<256x128xf32>
    %cst_2 = arith.constant 0.000000e+00 : f32
    %3 = vector.broadcast %cst_2 : f32 to vector<256x128xf32>
    %4 = vector.extract_strided_slice %1 {offsets = [0, 0], sizes = [256, 8], strides = [1, 1]} : vector<290x8xbf16> to vector<256x8xbf16>
    %c0_3 = arith.constant 0 : index
    %c0_4 = arith.constant 0 : index
    %c0_5 = arith.constant 0 : index
    %5 = vector.load %arg2[%c0_3, %c0_4, %c0_5] : memref<9x8x128xbf16, #tpu.memory_space<vmem>>, vector<1x8x128xbf16>
    %6 = vector.shape_cast %5 : vector<1x8x128xbf16> to vector<8x128xbf16>
    %cst_6 = arith.constant dense<0.000000e+00> : vector<256x128xf32>
    %7 = tpu.matmul %4, %6, %cst_6 {dimension_numbers = #tpu.dot_dimension_numbers<[1], [0], [0], [1], [0, 0, 1, 1], [], []>} : vector<256x8xbf16>, vector<8x128xbf16>, vector<256x128xf32> -> vector<256x128xf32>
    %8 = arith.addf %3, %7 : vector<256x128xf32>
    %9 = vector.extract_strided_slice %1 {offsets = [16, 0], sizes = [256, 8], strides = [1, 1]} : vector<290x8xbf16> to vector<256x8xbf16>
    %c3 = arith.constant 3 : index
    %c0_7 = arith.constant 0 : index
    %c0_8 = arith.constant 0 : index
    %10 = vector.load %arg2[%c3, %c0_7, %c0_8] : memref<9x8x128xbf16, #tpu.memory_space<vmem>>, vector<1x8x128xbf16>
    %11 = vector.shape_cast %10 : vector<1x8x128xbf16> to vector<8x128xbf16>
    %cst_9 = arith.constant dense<0.000000e+00> : vector<256x128xf32>
    %12 = tpu.matmul %9, %11, %cst_9 {dimension_numbers = #tpu.dot_dimension_numbers<[1], [0], [0], [1], [0, 0, 1, 1], [], []>} : vector<256x8xbf16>, vector<8x128xbf16>, vector<256x128xf32> -> vector<256x128xf32>
    %13 = arith.addf %8, %12 : vector<256x128xf32>
    %14 = vector.extract_strided_slice %1 {offsets = [32, 0], sizes = [256, 8], strides = [1, 1]} : vector<290x8xbf16> to vector<256x8xbf16>
    %c6 = arith.constant 6 : index
    %c0_10 = arith.constant 0 : index
    %c0_11 = arith.constant 0 : index
    %15 = vector.load %arg2[%c6, %c0_10, %c0_11] : memref<9x8x128xbf16, #tpu.memory_space<vmem>>, vector<1x8x128xbf16>
    %16 = vector.shape_cast %15 : vector<1x8x128xbf16> to vector<8x128xbf16>
    %cst_12 = arith.constant dense<0.000000e+00> : vector<256x128xf32>
    %17 = tpu.matmul %14, %16, %cst_12 {dimension_numbers = #tpu.dot_dimension_numbers<[1], [0], [0], [1], [0, 0, 1, 1], [], []>} : vector<256x8xbf16>, vector<8x128xbf16>, vector<256x128xf32> -> vector<256x128xf32>
    %18 = arith.addf %13, %17 : vector<256x128xf32>
    %c0_13 = arith.constant 0 : index
    %c0_14 = arith.constant 0 : index
    %19 = vector.load %arg3[%c0_13, %c0_14] : memref<256x1xf32, #tpu.memory_space<vmem>>, vector<256x1xf32>
    %20 = vector.broadcast %19 : vector<256x1xf32> to vector<256x128xf32>
    %21 = arith.mulf %18, %20 : vector<256x128xf32>
    %22 = arith.addf %2, %21 : vector<256x128xf32>
    %cst_15 = arith.constant 0.000000e+00 : f32
    %23 = vector.broadcast %cst_15 : f32 to vector<256x128xf32>
    %24 = vector.extract_strided_slice %1 {offsets = [1, 0], sizes = [256, 8], strides = [1, 1]} : vector<290x8xbf16> to vector<256x8xbf16>
    %c1 = arith.constant 1 : index
    %c0_16 = arith.constant 0 : index
    %c0_17 = arith.constant 0 : index
    %25 = vector.load %arg2[%c1, %c0_16, %c0_17] : memref<9x8x128xbf16, #tpu.memory_space<vmem>>, vector<1x8x128xbf16>
    %26 = vector.shape_cast %25 : vector<1x8x128xbf16> to vector<8x128xbf16>
    %cst_18 = arith.constant dense<0.000000e+00> : vector<256x128xf32>
    %27 = tpu.matmul %24, %26, %cst_18 {dimension_numbers = #tpu.dot_dimension_numbers<[1], [0], [0], [1], [0, 0, 1, 1], [], []>} : vector<256x8xbf16>, vector<8x128xbf16>, vector<256x128xf32> -> vector<256x128xf32>
    %28 = arith.addf %23, %27 : vector<256x128xf32>
    %29 = vector.extract_strided_slice %1 {offsets = [17, 0], sizes = [256, 8], strides = [1, 1]} : vector<290x8xbf16> to vector<256x8xbf16>
    %c4 = arith.constant 4 : index
    %c0_19 = arith.constant 0 : index
    %c0_20 = arith.constant 0 : index
    %30 = vector.load %arg2[%c4, %c0_19, %c0_20] : memref<9x8x128xbf16, #tpu.memory_space<vmem>>, vector<1x8x128xbf16>
    %31 = vector.shape_cast %30 : vector<1x8x128xbf16> to vector<8x128xbf16>
    %cst_21 = arith.constant dense<0.000000e+00> : vector<256x128xf32>
    %32 = tpu.matmul %29, %31, %cst_21 {dimension_numbers = #tpu.dot_dimension_numbers<[1], [0], [0], [1], [0, 0, 1, 1], [], []>} : vector<256x8xbf16>, vector<8x128xbf16>, vector<256x128xf32> -> vector<256x128xf32>
    %33 = arith.addf %28, %32 : vector<256x128xf32>
    %34 = vector.extract_strided_slice %1 {offsets = [33, 0], sizes = [256, 8], strides = [1, 1]} : vector<290x8xbf16> to vector<256x8xbf16>
    %c7 = arith.constant 7 : index
    %c0_22 = arith.constant 0 : index
    %c0_23 = arith.constant 0 : index
    %35 = vector.load %arg2[%c7, %c0_22, %c0_23] : memref<9x8x128xbf16, #tpu.memory_space<vmem>>, vector<1x8x128xbf16>
    %36 = vector.shape_cast %35 : vector<1x8x128xbf16> to vector<8x128xbf16>
    %cst_24 = arith.constant dense<0.000000e+00> : vector<256x128xf32>
    %37 = tpu.matmul %34, %36, %cst_24 {dimension_numbers = #tpu.dot_dimension_numbers<[1], [0], [0], [1], [0, 0, 1, 1], [], []>} : vector<256x8xbf16>, vector<8x128xbf16>, vector<256x128xf32> -> vector<256x128xf32>
    %38 = arith.addf %33, %37 : vector<256x128xf32>
    %39 = arith.addf %22, %38 : vector<256x128xf32>
    %cst_25 = arith.constant 0.000000e+00 : f32
    %40 = vector.broadcast %cst_25 : f32 to vector<256x128xf32>
    %41 = vector.extract_strided_slice %1 {offsets = [2, 0], sizes = [256, 8], strides = [1, 1]} : vector<290x8xbf16> to vector<256x8xbf16>
    %c2 = arith.constant 2 : index
    %c0_26 = arith.constant 0 : index
    %c0_27 = arith.constant 0 : index
    %42 = vector.load %arg2[%c2, %c0_26, %c0_27] : memref<9x8x128xbf16, #tpu.memory_space<vmem>>, vector<1x8x128xbf16>
    %43 = vector.shape_cast %42 : vector<1x8x128xbf16> to vector<8x128xbf16>
    %cst_28 = arith.constant dense<0.000000e+00> : vector<256x128xf32>
    %44 = tpu.matmul %41, %43, %cst_28 {dimension_numbers = #tpu.dot_dimension_numbers<[1], [0], [0], [1], [0, 0, 1, 1], [], []>} : vector<256x8xbf16>, vector<8x128xbf16>, vector<256x128xf32> -> vector<256x128xf32>
    %45 = arith.addf %40, %44 : vector<256x128xf32>
    %46 = vector.extract_strided_slice %1 {offsets = [18, 0], sizes = [256, 8], strides = [1, 1]} : vector<290x8xbf16> to vector<256x8xbf16>
    %c5 = arith.constant 5 : index
    %c0_29 = arith.constant 0 : index
    %c0_30 = arith.constant 0 : index
    %47 = vector.load %arg2[%c5, %c0_29, %c0_30] : memref<9x8x128xbf16, #tpu.memory_space<vmem>>, vector<1x8x128xbf16>
    %48 = vector.shape_cast %47 : vector<1x8x128xbf16> to vector<8x128xbf16>
    %cst_31 = arith.constant dense<0.000000e+00> : vector<256x128xf32>
    %49 = tpu.matmul %46, %48, %cst_31 {dimension_numbers = #tpu.dot_dimension_numbers<[1], [0], [0], [1], [0, 0, 1, 1], [], []>} : vector<256x8xbf16>, vector<8x128xbf16>, vector<256x128xf32> -> vector<256x128xf32>
    %50 = arith.addf %45, %49 : vector<256x128xf32>
    %51 = vector.extract_strided_slice %1 {offsets = [34, 0], sizes = [256, 8], strides = [1, 1]} : vector<290x8xbf16> to vector<256x8xbf16>
    %c8 = arith.constant 8 : index
    %c0_32 = arith.constant 0 : index
    %c0_33 = arith.constant 0 : index
    %52 = vector.load %arg2[%c8, %c0_32, %c0_33] : memref<9x8x128xbf16, #tpu.memory_space<vmem>>, vector<1x8x128xbf16>
    %53 = vector.shape_cast %52 : vector<1x8x128xbf16> to vector<8x128xbf16>
    %cst_34 = arith.constant dense<0.000000e+00> : vector<256x128xf32>
    %54 = tpu.matmul %51, %53, %cst_34 {dimension_numbers = #tpu.dot_dimension_numbers<[1], [0], [0], [1], [0, 0, 1, 1], [], []>} : vector<256x8xbf16>, vector<8x128xbf16>, vector<256x128xf32> -> vector<256x128xf32>
    %55 = arith.addf %50, %54 : vector<256x128xf32>
    %c0_35 = arith.constant 0 : index
    %c0_36 = arith.constant 0 : index
    %56 = vector.load %arg4[%c0_35, %c0_36] : memref<256x1xf32, #tpu.memory_space<vmem>>, vector<256x1xf32>
    %57 = vector.broadcast %56 : vector<256x1xf32> to vector<256x128xf32>
    %58 = arith.mulf %55, %57 : vector<256x128xf32>
    %59 = arith.addf %39, %58 : vector<256x128xf32>
    %c0_37 = arith.constant 0 : index
    %c0_38 = arith.constant 0 : index
    %60 = vector.load %arg5[%c0_37, %c0_38] : memref<1x128xf32, #tpu.memory_space<vmem>>, vector<1x128xf32>
    %61 = vector.broadcast %60 : vector<1x128xf32> to vector<256x128xf32>
    %62 = arith.addf %59, %61 : vector<256x128xf32>
    %63 = tpu.iota {dimensions = array<i32: 1>} : vector<256x128xi32>
    %cst_39 = arith.constant 0.000000e+00 : f32
    %64 = vector.broadcast %cst_39 : f32 to vector<256x128xf32>
    %65 = arith.subf %64, %62 : vector<256x128xf32>
    %66 = math.exp %65 : vector<256x128xf32>
    %cst_40 = arith.constant 1.000000e+00 : f32
    %67 = vector.broadcast %cst_40 : f32 to vector<256x128xf32>
    %68 = arith.addf %67, %66 : vector<256x128xf32>
    %69 = tpu.reciprocal %68 {approx = true} : vector<256x128xf32> -> vector<256x128xf32>
    %c18_i32 = arith.constant 18 : i32
    %70 = vector.broadcast %c18_i32 : i32 to vector<256x128xi32>
    %71 = arith.cmpi sge, %63, %70 : vector<256x128xi32>
    %c27_i32 = arith.constant 27 : i32
    %72 = vector.broadcast %c27_i32 : i32 to vector<256x128xi32>
    %73 = arith.cmpi slt, %63, %72 : vector<256x128xi32>
    %74 = arith.andi %71, %73 : vector<256x128xi1>
    %75 = arith.select %74, %69, %62 : vector<256x128xi1>, vector<256x128xf32>
    %c0_41 = arith.constant 0 : index
    %c0_42 = arith.constant 0 : index
    %c0_43 = arith.constant 0 : index
    %76 = vector.load %arg6[%c0_41, %c0_42, %c0_43] : memref<1x256x128xf32, #tpu.memory_space<vmem>>, vector<1x256x128xf32>
    %77 = vector.shape_cast %76 : vector<1x256x128xf32> to vector<256x128xf32>
    %78 = vector.shape_cast %75 : vector<256x128xf32> to vector<1x256x128xf32>
    tpu.vector_store %arg6[%c0_41, %c0_42, %c0_43], %78 {strides = array<i32>} : memref<1x256x128xf32, #tpu.memory_space<vmem>>, vector<1x256x128xf32>,
    return
  }
  func.func @transform_0(%arg0: i32) -> (i32, i32, i32) {
    %c0_i32 = arith.constant 0 : i32
    %c0_i32_0 = arith.constant 0 : i32
    %c0_i32_1 = arith.constant 0 : i32
    return %arg0, %c0_i32, %c0_i32_0 : i32, i32, i32
  }
  func.func @transform_1(%arg0: i32) -> (i32, i32, i32) {
    %c0_i32 = arith.constant 0 : i32
    %c0_i32_0 = arith.constant 0 : i32
    %c0_i32_1 = arith.constant 0 : i32
    %c0_i32_2 = arith.constant 0 : i32
    return %c0_i32, %c0_i32_0, %c0_i32_1 : i32, i32, i32
  }
  func.func @transform_2(%arg0: i32) -> (i32, i32) {
    %c0_i32 = arith.constant 0 : i32
    %c0_i32_0 = arith.constant 0 : i32
    %c0_i32_1 = arith.constant 0 : i32
    return %c0_i32, %c0_i32_0 : i32, i32
  }
  func.func @transform_3(%arg0: i32) -> (i32, i32) {
    %c0_i32 = arith.constant 0 : i32
    %c0_i32_0 = arith.constant 0 : i32
    %c0_i32_1 = arith.constant 0 : i32
    return %c0_i32, %c0_i32_0 : i32, i32
  }
  func.func @transform_4(%arg0: i32) -> (i32, i32) {
    %c0_i32 = arith.constant 0 : i32
    %c0_i32_0 = arith.constant 0 : i32
    %c0_i32_1 = arith.constant 0 : i32
    return %c0_i32, %c0_i32_0 : i32, i32
  }
  func.func @transform_5(%arg0: i32) -> (i32, i32, i32) {
    %c0_i32 = arith.constant 0 : i32
    %c0_i32_0 = arith.constant 0 : i32
    %c0_i32_1 = arith.constant 0 : i32
    return %arg0, %c0_i32, %c0_i32_0 : i32, i32, i32
  }
}

module attributes {stable_mosaic.version = 11 : i64} {
  func.func @_dual_matmul_kernel(%arg0: i32, %arg1: memref<16x1152xbf16, #tpu.memory_space<vmem>>, %arg2: memref<1152x128xbf16, #tpu.memory_space<vmem>>, %arg3: memref<16x256xbf16, #tpu.memory_space<vmem>>, %arg4: memref<256x128xbf16, #tpu.memory_space<vmem>>, %arg5: memref<1x128xf32, #tpu.memory_space<vmem>>, %arg6: memref<16x128xf32, #tpu.memory_space<vmem>>) attributes {dimension_semantics = [#tpu.dimension_semantics<parallel>], iteration_bounds = array<i64: 1>, scalar_prefetch = 0 : i64, scratch_operands = 0 : i64, tpu.core_type = #tpu.core_type<tc>, window_params = [{transform_indices = @transform_0, window_bounds = array<i64: 16, 1152>}, {pipeline_mode = #tpu.pipeline_mode<synchronous>, transform_indices = @transform_1, window_bounds = array<i64: 1152, 128>}, {transform_indices = @transform_2, window_bounds = array<i64: 16, 256>}, {pipeline_mode = #tpu.pipeline_mode<synchronous>, transform_indices = @transform_3, window_bounds = array<i64: 256, 128>}, {pipeline_mode = #tpu.pipeline_mode<synchronous>, transform_indices = @transform_4, window_bounds = array<i64: 1, 128>}, {transform_indices = @transform_5, window_bounds = array<i64: 16, 128>}]} {
    %c0 = arith.constant 0 : index
    %c0_0 = arith.constant 0 : index
    %0 = vector.load %arg1[%c0, %c0_0] : memref<16x1152xbf16, #tpu.memory_space<vmem>>, vector<16x1152xbf16>
    %c0_1 = arith.constant 0 : index
    %c0_2 = arith.constant 0 : index
    %1 = vector.load %arg2[%c0_1, %c0_2] : memref<1152x128xbf16, #tpu.memory_space<vmem>>, vector<1152x128xbf16>
    %cst = arith.constant dense<0.000000e+00> : vector<16x128xf32>
    %2 = tpu.matmul %0, %1, %cst {dimension_numbers = #tpu.dot_dimension_numbers<[1], [0], [0], [1], [0, 0, 1, 1], [], []>} : vector<16x1152xbf16>, vector<1152x128xbf16>, vector<16x128xf32> -> vector<16x128xf32>
    %c0_3 = arith.constant 0 : index
    %c0_4 = arith.constant 0 : index
    %3 = vector.load %arg3[%c0_3, %c0_4] : memref<16x256xbf16, #tpu.memory_space<vmem>>, vector<16x256xbf16>
    %c0_5 = arith.constant 0 : index
    %c0_6 = arith.constant 0 : index
    %4 = vector.load %arg4[%c0_5, %c0_6] : memref<256x128xbf16, #tpu.memory_space<vmem>>, vector<256x128xbf16>
    %cst_7 = arith.constant dense<0.000000e+00> : vector<16x128xf32>
    %5 = tpu.matmul %3, %4, %cst_7 {dimension_numbers = #tpu.dot_dimension_numbers<[1], [0], [0], [1], [0, 0, 1, 1], [], []>} : vector<16x256xbf16>, vector<256x128xbf16>, vector<16x128xf32> -> vector<16x128xf32>
    %6 = arith.addf %2, %5 : vector<16x128xf32>
    %c0_8 = arith.constant 0 : index
    %c0_9 = arith.constant 0 : index
    %7 = vector.load %arg5[%c0_8, %c0_9] : memref<1x128xf32, #tpu.memory_space<vmem>>, vector<1x128xf32>
    %8 = vector.broadcast %7 : vector<1x128xf32> to vector<16x128xf32>
    %9 = arith.addf %6, %8 : vector<16x128xf32>
    %cst_10 = arith.constant 0.000000e+00 : f32
    %10 = vector.broadcast %cst_10 : f32 to vector<16x128xf32>
    %11 = arith.maximumf %9, %10 : vector<16x128xf32>
    %c0_11 = arith.constant 0 : index
    %c0_12 = arith.constant 0 : index
    %12 = vector.load %arg6[%c0_11, %c0_12] : memref<16x128xf32, #tpu.memory_space<vmem>>, vector<16x128xf32>
    tpu.vector_store %arg6[%c0_11, %c0_12], %11 {strides = array<i32>} : memref<16x128xf32, #tpu.memory_space<vmem>>, vector<16x128xf32>,
    return
  }
  func.func @transform_0(%arg0: i32) -> (i32, i32) {
    %c0_i32 = arith.constant 0 : i32
    %c0_i32_0 = arith.constant 0 : i32
    return %arg0, %c0_i32 : i32, i32
  }
  func.func @transform_1(%arg0: i32) -> (i32, i32) {
    %c0_i32 = arith.constant 0 : i32
    %c0_i32_0 = arith.constant 0 : i32
    %c0_i32_1 = arith.constant 0 : i32
    return %c0_i32, %c0_i32_0 : i32, i32
  }
  func.func @transform_2(%arg0: i32) -> (i32, i32) {
    %c0_i32 = arith.constant 0 : i32
    %c0_i32_0 = arith.constant 0 : i32
    return %arg0, %c0_i32 : i32, i32
  }
  func.func @transform_3(%arg0: i32) -> (i32, i32) {
    %c0_i32 = arith.constant 0 : i32
    %c0_i32_0 = arith.constant 0 : i32
    %c0_i32_1 = arith.constant 0 : i32
    return %c0_i32, %c0_i32_0 : i32, i32
  }
  func.func @transform_4(%arg0: i32) -> (i32, i32) {
    %c0_i32 = arith.constant 0 : i32
    %c0_i32_0 = arith.constant 0 : i32
    %c0_i32_1 = arith.constant 0 : i32
    return %c0_i32, %c0_i32_0 : i32, i32
  }
  func.func @transform_5(%arg0: i32) -> (i32, i32) {
    %c0_i32 = arith.constant 0 : i32
    %c0_i32_0 = arith.constant 0 : i32
    return %arg0, %c0_i32 : i32, i32
  }
}

</mosaic_0001>

<llo_original>
// kernel: tile.13
$region0: #{tile.13}
  #allocation0 [shape = 's32[1]{0}', space=sflag, size = 0x4, scoped, tag = 'scoped memory for tile.13']
  %s0 = inlined_call_operand.vmem [shape: f32[8], index: 0, kind: input, shape index: {}]
  %s1 = inlined_call_operand.vmem [shape: f32[16,8], index: 1, kind: output, shape index: {}]
  // Predicated region
  $region2: #{tile.13} parent=0 // pred_check
    _
  $region3: #{tile.13} parent=0 // pred_check_branch
    %3 = sbr.rel (0) target = $region5
  $region4: #{tile.13} parent=0 // pred_region
    _
  $region5: #{tile.13} parent=0 // pred_fallthru
    _
  %v4 = vld [vmem:[%s0] ss:$0 sm:$0xff]
  %5 = vst [vmem:[%s1] sm:$0xff] %v4
  %s6 = scalar_lea.vmem %s1, 8
  %7 = vst [vmem:[%s6] sm:$0xff] %v4

// kernel: tile.14
$region0: #{tile.14}
  %s0 = inlined_call_operand.vmem [shape: f32[16,8], index: 0, kind: input, shape index: {}]
  %s1 = inlined_call_operand.vmem [shape: f32[1,128], index: 1, kind: output, shape index: {}]
  $region1: #{tile.14} parent=0
    #allocation0 [shape = 'u8[4096]{0}', space=vmem, size = 0x1000, scoped, tag = 'scoped mem for output reshape']
    %v2 = vld [vmem:[%s0] sm:$0x1]
    %vm3 = vcmask 64512
    %4 = vst.msk [vmem:[#allocation0] sm:$0x1] %vm3, %v2
    %s5 = scalar_lea.vmem %s0, 15
    %v6 = vld [vmem:[%s5] sm:$0x1]
    %7 = vrot.lane.b32.xlu0 %v6, 120
    %v8 = vpop.permute.xlu0 %7
    %vm9 = vcmask 1048512
    %10 = vst.msk [vmem:[#allocation0] sm:$0x1] %vm9, %v8
    %s11 = scalar_lea.vmem %s0, 14
    %v12 = vld [vmem:[%s11] sm:$0x1]
    %13 = vrot.lane.b32.xlu0 %v12, 112
    %v14 = vpop.permute.xlu0 %13
    %vm15 = vcmask 982912
    %16 = vst.msk [vmem:[#allocation0] sm:$0x1] %vm15, %v14
    %s17 = scalar_lea.vmem %s0, 13
    %v18 = vld [vmem:[%s17] sm:$0x1]
    %19 = vrot.lane.b32.xlu0 %v18, 104
    %v20 = vpop.permute.xlu0 %19
    %vm21 = vcmask 917312
    %22 = vst.msk [vmem:[#allocation0] sm:$0x1] %vm21, %v20
    %s23 = scalar_lea.vmem %s0, 12
    %v24 = vld [vmem:[%s23] sm:$0x1]
    %25 = vrot.lane.b32.xlu0 %v24, 96
    %v26 = vpop.permute.xlu0 %25
    %vm27 = vcmask 851712
    %28 = vst.msk [vmem:[#allocation0] sm:$0x1] %vm27, %v26
    %s29 = scalar_lea.vmem %s0, 11
    %v30 = vld [vmem:[%s29] sm:$0x1]
    %31 = vrot.lane.b32.xlu0 %v30, 88
    %v32 = vpop.permute.xlu0 %31
    %vm33 = vcmask 786112
    %34 = vst.msk [vmem:[#allocation0] sm:$0x1] %vm33, %v32
    %s35 = scalar_lea.vmem %s0, 10
    %v36 = vld [vmem:[%s35] sm:$0x1]
    %37 = vrot.lane.b32.xlu0 %v36, 80
    %v38 = vpop.permute.xlu0 %37
    %vm39 = vcmask 720512
    %40 = vst.msk [vmem:[#allocation0] sm:$0x1] %vm39, %v38
    %s41 = scalar_lea.vmem %s0, 9
    %v42 = vld [vmem:[%s41] sm:$0x1]
    %43 = vrot.lane.b32.xlu0 %v42, 72
    %v44 = vpop.permute.xlu0 %43
    %vm45 = vcmask 654912
    %46 = vst.msk [vmem:[#allocation0] sm:$0x1] %vm45, %v44
    %s47 = scalar_lea.vmem %s0, 8
    %v48 = vld [vmem:[%s47] sm:$0x1]
    %49 = vrot.lane.b32.xlu0 %v48, 64
    %v50 = vpop.permute.xlu0 %49
    %vm51 = vcmask 589312
    %52 = vst.msk [vmem:[#allocation0] sm:$0x1] %vm51, %v50
    %s53 = scalar_lea.vmem %s0, 7
    %v54 = vld [vmem:[%s53] sm:$0x1]
    %55 = vrot.lane.b32.xlu0 %v54, 56
    %v56 = vpop.permute.xlu0 %55
    %vm57 = vcmask 523712
    %58 = vst.msk [vmem:[#allocation0] sm:$0x1] %vm57, %v56
    %s59 = scalar_lea.vmem %s0, 6
    %v60 = vld [vmem:[%s59] sm:$0x1]
    %61 = vrot.lane.b32.xlu0 %v60, 48
    %v62 = vpop.permute.xlu0 %61
    %vm63 = vcmask 458112
    %64 = vst.msk [vmem:[#allocation0] sm:$0x1] %vm63, %v62
    %s65 = scalar_lea.vmem %s0, 5
    %v66 = vld [vmem:[%s65] sm:$0x1]
    %67 = vrot.lane.b32.xlu0 %v66, 40
    %v68 = vpop.permute.xlu0 %67
    %vm69 = vcmask 392512
    %70 = vst.msk [vmem:[#allocation0] sm:$0x1] %vm69, %v68
    %s71 = scalar_lea.vmem %s0, 4
    %v72 = vld [vmem:[%s71] sm:$0x1]
    %73 = vrot.lane.b32.xlu0 %v72, 32
    %v74 = vpop.permute.xlu0 %73
    %vm75 = vcmask 326912
    %76 = vst.msk [vmem:[#allocation0] sm:$0x1] %vm75, %v74
    %s77 = scalar_lea.vmem %s0, 3
    %v78 = vld [vmem:[%s77] sm:$0x1]
    %79 = vrot.lane.b32.xlu0 %v78, 24
    %v80 = vpop.permute.xlu0 %79
    %vm81 = vcmask 261312
    %82 = vst.msk [vmem:[#allocation0] sm:$0x1] %vm81, %v80
    %s83 = scalar_lea.vmem %s0, 2
    %v84 = vld [vmem:[%s83] sm:$0x1]
    %85 = vrot.lane.b32.xlu0 %v84, 16
    %v86 = vpop.permute.xlu0 %85
    %vm87 = vcmask 195712
    %88 = vst.msk [vmem:[#allocation0] sm:$0x1] %vm87, %v86
    %s89 = scalar_lea.vmem %s0, 1
    %v90 = vld [vmem:[%s89] sm:$0x1]
    %91 = vrot.lane.b32.xlu0 %v90, 8
    %v92 = vpop.permute.xlu0 %91
    %vm93 = vcmask 130112
    %94 = vst.msk [vmem:[#allocation0] sm:$0x1] %vm93, %v92
    %s96 = sshllo.u32 0, 1
    %v98 = vld [vmem:[#allocation0] sm:%s96]
    %s99 = sshllo.u32 0, 1
    %100 = vst [vmem:[%s1] sm:%s99] %v98

// kernel: tile.18
$region0: #{tile.18}
  #allocation0 [shape = 's32[1]{0}', space=sflag, size = 0x4, scoped, tag = 'scoped memory for tile.18']
  %s0 = inlined_call_operand.vmem [shape: f32[4], index: 0, kind: input, shape index: {}]
  %s1 = inlined_call_operand.vmem [shape: f32[32,4], index: 1, kind: output, shape index: {}]
  // Predicated region
  $region2: #{tile.18} parent=0 // pred_check
    _
  $region3: #{tile.18} parent=0 // pred_check_branch
    %3 = sbr.rel (0) target = $region5
  $region4: #{tile.18} parent=0 // pred_region
    _
  $region5: #{tile.18} parent=0 // pred_fallthru
    _
  %v4 = vld [vmem:[%s0] ss:$0 sm:$0xff]
  %5 = vst [vmem:[%s1] sm:$0xff] %v4
  %s6 = scalar_lea.vmem %s1, 8
  %7 = vst [vmem:[%s6] sm:$0xff] %v4
  %s8 = scalar_lea.vmem %s1, 16
  %9 = vst [vmem:[%s8] sm:$0xff] %v4
  %s10 = scalar_lea.vmem %s1, 24
  %11 = vst [vmem:[%s10] sm:$0xff] %v4

// kernel: tile.19
$region0: #{tile.19}
  %s0 = inlined_call_operand.vmem [shape: f32[32,4], index: 0, kind: input, shape index: {}]
  %s1 = inlined_call_operand.vmem [shape: f32[1,128], index: 1, kind: output, shape index: {}]
  $region1: #{tile.19} parent=0
    #allocation0 [shape = 'u8[4096]{0}', space=vmem, size = 0x1000, scoped, tag = 'scoped mem for output reshape']
    %v2 = vld [vmem:[%s0] sm:$0x1]
    %vm3 = vcmask 31744
    %4 = vst.msk [vmem:[#allocation0] sm:$0x1] %vm3, %v2
    %s5 = scalar_lea.vmem %s0, 31
    %v6 = vld [vmem:[%s5] sm:$0x1]
    %7 = vrot.lane.b32.xlu0 %v6, 124
    %v8 = vpop.permute.xlu0 %7
    %vm9 = vcmask 1048544
    %10 = vst.msk [vmem:[#allocation0] sm:$0x1] %vm9, %v8
    %s11 = scalar_lea.vmem %s0, 30
    %v12 = vld [vmem:[%s11] sm:$0x1]
    %13 = vrot.lane.b32.xlu0 %v12, 120
    %v14 = vpop.permute.xlu0 %13
    %vm15 = vcmask 1015744
    %16 = vst.msk [vmem:[#allocation0] sm:$0x1] %vm15, %v14
    %s17 = scalar_lea.vmem %s0, 29
    %v18 = vld [vmem:[%s17] sm:$0x1]
    %19 = vrot.lane.b32.xlu0 %v18, 116
    %v20 = vpop.permute.xlu0 %19
    %vm21 = vcmask 982944
    %22 = vst.msk [vmem:[#allocation0] sm:$0x1] %vm21, %v20
    %s23 = scalar_lea.vmem %s0, 28
    %v24 = vld [vmem:[%s23] sm:$0x1]
    %25 = vrot.lane.b32.xlu0 %v24, 112
    %v26 = vpop.permute.xlu0 %25
    %vm27 = vcmask 950144
    %28 = vst.msk [vmem:[#allocation0] sm:$0x1] %vm27, %v26
    %s29 = scalar_lea.vmem %s0, 27
    %v30 = vld [vmem:[%s29] sm:$0x1]
    %31 = vrot.lane.b32.xlu0 %v30, 108
    %v32 = vpop.permute.xlu0 %31
    %vm33 = vcmask 917344
    %34 = vst.msk [vmem:[#allocation0] sm:$0x1] %vm33, %v32
    %s35 = scalar_lea.vmem %s0, 26
    %v36 = vld [vmem:[%s35] sm:$0x1]
    %37 = vrot.lane.b32.xlu0 %v36, 104
    %v38 = vpop.permute.xlu0 %37
    %vm39 = vcmask 884544
    %40 = vst.msk [vmem:[#allocation0] sm:$0x1] %vm39, %v38
    %s41 = scalar_lea.vmem %s0, 25
    %v42 = vld [vmem:[%s41] sm:$0x1]
    %43 = vrot.lane.b32.xlu0 %v42, 100
    %v44 = vpop.permute.xlu0 %43
    %vm45 = vcmask 851744
    %46 = vst.msk [vmem:[#allocation0] sm:$0x1] %vm45, %v44
    %s47 = scalar_lea.vmem %s0, 24
    %v48 = vld [vmem:[%s47] sm:$0x1]
    %49 = vrot.lane.b32.xlu0 %v48, 96
    %v50 = vpop.permute.xlu0 %49
    %vm51 = vcmask 818944
    %52 = vst.msk [vmem:[#allocation0] sm:$0x1] %vm51, %v50
    %s53 = scalar_lea.vmem %s0, 23
    %v54 = vld [vmem:[%s53] sm:$0x1]
    %55 = vrot.lane.b32.xlu0 %v54, 92
    %v56 = vpop.permute.xlu0 %55
    %vm57 = vcmask 786144
    %58 = vst.msk [vmem:[#allocation0] sm:$0x1] %vm57, %v56
    %s59 = scalar_lea.vmem %s0, 22
    %v60 = vld [vmem:[%s59] sm:$0x1]
    %61 = vrot.lane.b32.xlu0 %v60, 88
    %v62 = vpop.permute.xlu0 %61
    %vm63 = vcmask 753344
    %64 = vst.msk [vmem:[#allocation0] sm:$0x1] %vm63, %v62
    %s65 = scalar_lea.vmem %s0, 21
    %v66 = vld [vmem:[%s65] sm:$0x1]
    %67 = vrot.lane.b32.xlu0 %v66, 84
    %v68 = vpop.permute.xlu0 %67
    %vm69 = vcmask 720544
    %70 = vst.msk [vmem:[#allocation0] sm:$0x1] %vm69, %v68
    %s71 = scalar_lea.vmem %s0, 20
    %v72 = vld [vmem:[%s71] sm:$0x1]
    %73 = vrot.lane.b32.xlu0 %v72, 80
    %v74 = vpop.permute.xlu0 %73
    %vm75 = vcmask 687744
    %76 = vst.msk [vmem:[#allocation0] sm:$0x1] %vm75, %v74
    %s77 = scalar_lea.vmem %s0, 19
    %v78 = vld [vmem:[%s77] sm:$0x1]
    %79 = vrot.lane.b32.xlu0 %v78, 76
    %v80 = vpop.permute.xlu0 %79
    %vm81 = vcmask 654944
    %82 = vst.msk [vmem:[#allocation0] sm:$0x1] %vm81, %v80
    %s83 = scalar_lea.vmem %s0, 18
    %v84 = vld [vmem:[%s83] sm:$0x1]
    %85 = vrot.lane.b32.xlu0 %v84, 72
    %v86 = vpop.permute.xlu0 %85
    %vm87 = vcmask 622144
    %88 = vst.msk [vmem:[#allocation0] sm:$0x1] %vm87, %v86
    %s89 = scalar_lea.vmem %s0, 17
    %v90 = vld [vmem:[%s89] sm:$0x1]
    %91 = vrot.lane.b32.xlu0 %v90, 68
    %v92 = vpop.permute.xlu0 %91
    %vm93 = vcmask 589344
    %94 = vst.msk [vmem:[#allocation0] sm:$0x1] %vm93, %v92
    %s95 = scalar_lea.vmem %s0, 16
    %v96 = vld [vmem:[%s95] sm:$0x1]
    %97 = vrot.lane.b32.xlu0 %v96, 64
    %v98 = vpop.permute.xlu0 %97
    %vm99 = vcmask 556544
    %100 = vst.msk [vmem:[#allocation0] sm:$0x1] %vm99, %v98
    %s101 = scalar_lea.vmem %s0, 15
    %v102 = vld [vmem:[%s101] sm:$0x1]
    %103 = vrot.lane.b32.xlu0 %v102, 60
    %v104 = vpop.permute.xlu0 %103
    %vm105 = vcmask 523744
    %106 = vst.msk [vmem:[#allocation0] sm:$0x1] %vm105, %v104
    %s107 = scalar_lea.vmem %s0, 14
    %v108 = vld [vmem:[%s107] sm:$0x1]
    %109 = vrot.lane.b32.xlu0 %v108, 56
    %v110 = vpop.permute.xlu0 %109
    %vm111 = vcmask 490944
    %112 = vst.msk [vmem:[#allocation0] sm:$0x1] %vm111, %v110
    %s113 = scalar_lea.vmem %s0, 13
    %v114 = vld [vmem:[%s113] sm:$0x1]
    %115 = vrot.lane.b32.xlu0 %v114, 52
    %v116 = vpop.permute.xlu0 %115
    %vm117 = vcmask 458144
    %118 = vst.msk [vmem:[#allocation0] sm:$0x1] %vm117, %v116
    %s119 = scalar_lea.vmem %s0, 12
    %v120 = vld [vmem:[%s119] sm:$0x1]
    %121 = vrot.lane.b32.xlu0 %v120, 48
    %v122 = vpop.permute.xlu0 %121
    %vm123 = vcmask 425344
    %124 = vst.msk [vmem:[#allocation0] sm:$0x1] %vm123, %v122
    %s125 = scalar_lea.vmem %s0, 11
    %v126 = vld [vmem:[%s125] sm:$0x1]
    %127 = vrot.lane.b32.xlu0 %v126, 44
    %v128 = vpop.permute.xlu0 %127
    %vm129 = vcmask 392544
    %130 = vst.msk [vmem:[#allocation0] sm:$0x1] %vm129, %v128
    %s131 = scalar_lea.vmem %s0, 10
    %v132 = vld [vmem:[%s131] sm:$0x1]
    %133 = vrot.lane.b32.xlu0 %v132, 40
    %v134 = vpop.permute.xlu0 %133
    %vm135 = vcmask 359744
    %136 = vst.msk [vmem:[#allocation0] sm:$0x1] %vm135, %v134
    %s137 = scalar_lea.vmem %s0, 9
    %v138 = vld [vmem:[%s137] sm:$0x1]
    %139 = vrot.lane.b32.xlu0 %v138, 36
    %v140 = vpop.permute.xlu0 %139
    %vm141 = vcmask 326944
    %142 = vst.msk [vmem:[#allocation0] sm:$0x1] %vm141, %v140
    %s143 = scalar_lea.vmem %s0, 8
    %v144 = vld [vmem:[%s143] sm:$0x1]
    %145 = vrot.lane.b32.xlu0 %v144, 32
    %v146 = vpop.permute.xlu0 %145
    %vm147 = vcmask 294144
    %148 = vst.msk [vmem:[#allocation0] sm:$0x1] %vm147, %v146
    %s149 = scalar_lea.vmem %s0, 7
    %v150 = vld [vmem:[%s149] sm:$0x1]
    %151 = vrot.lane.b32.xlu0 %v150, 28
    %v152 = vpop.permute.xlu0 %151
    %vm153 = vcmask 261344
    %154 = vst.msk [vmem:[#allocation0] sm:$0x1] %vm153, %v152
    %s155 = scalar_lea.vmem %s0, 6
    %v156 = vld [vmem:[%s155] sm:$0x1]
    %157 = vrot.lane.b32.xlu0 %v156, 24
    %v158 = vpop.permute.xlu0 %157
    %vm159 = vcmask 228544
    %160 = vst.msk [vmem:[#allocation0] sm:$0x1] %vm159, %v158
    %s161 = scalar_lea.vmem %s0, 5
    %v162 = vld [vmem:[%s161] sm:$0x1]
    %163 = vrot.lane.b32.xlu0 %v162, 20
    %v164 = vpop.permute.xlu0 %163
    %vm165 = vcmask 195744
    %166 = vst.msk [vmem:[#allocation0] sm:$0x1] %vm165, %v164
    %s167 = scalar_lea.vmem %s0, 4
    %v168 = vld [vmem:[%s167] sm:$0x1]
    %169 = vrot.lane.b32.xlu0 %v168, 16
    %v170 = vpop.permute.xlu0 %169
    %vm171 = vcmask 162944
    %172 = vst.msk [vmem:[#allocation0] sm:$0x1] %vm171, %v170
    %s173 = scalar_lea.vmem %s0, 3
    %v174 = vld [vmem:[%s173] sm:$0x1]
    %175 = vrot.lane.b32.xlu0 %v174, 12
    %v176 = vpop.permute.xlu0 %175
    %vm177 = vcmask 130144
    %178 = vst.msk [vmem:[#allocation0] sm:$0x1] %vm177, %v176
    %s179 = scalar_lea.vmem %s0, 2
    %v180 = vld [vmem:[%s179] sm:$0x1]
    %181 = vrot.lane.b32.xlu0 %v180, 8
    %v182 = vpop.permute.xlu0 %181
    %vm183 = vcmask 97344
    %184 = vst.msk [vmem:[#allocation0] sm:$0x1] %vm183, %v182
    %s185 = scalar_lea.vmem %s0, 1
    %v186 = vld [vmem:[%s185] sm:$0x1]
    %187 = vrot.lane.b32.xlu0 %v186, 4
    %v188 = vpop.permute.xlu0 %187
    %vm189 = vcmask 64544
    %190 = vst.msk [vmem:[#allocation0] sm:$0x1] %vm189, %v188
    %s192 = sshllo.u32 0, 1
    %v194 = vld [vmem:[#allocation0] sm:%s192]
    %s195 = sshllo.u32 0, 1
    %196 = vst [vmem:[%s1] sm:%s195] %v194

</llo_original>
